<compile_context>
chip_gen: v5e
topology: v5e:2x2
jax: 0.10.0
libtpu: 0.0.40
codegen_flags: <defaults>
</compile_context>

<pallas_src>
import functools

import jax
import jax.numpy as jnp
from jax.experimental import pallas as pl
from jax.experimental.pallas import tpu as pltpu

_LANE = 128  # TPU vreg lane width


def _trunknet_kernel(yT_ref, w1t_ref, b1_ref, w2t_ref, b2_ref, w3t_ref, b3_ref,
                     oT_ref, *, activ, input_dim, mxu_dtype):
    """Fused 3-layer MLP on one lane-dense batch tile (features x batch)."""

    def act(x):
        if activ == 'silu':
            return x * jax.nn.sigmoid(x)
        elif activ == 'leaky':
            return jnp.where(x >= 0, x, 0.01 * x)  # PyTorch LeakyReLU default slope
        return jnp.maximum(x, 0.0)

    x = yT_ref[...].astype(jnp.float32)            # (input_dim, bt)

    # ---- Layer 1: h1^T = W1^T @ y^T + b1
    if input_dim <= 8:
        # K is tiny -> VPU broadcast FMA (outer-product accumulation), skip MXU.
        w1t = w1t_ref[...].astype(jnp.float32)     # (H, input_dim)
        h = b1_ref[...].astype(jnp.float32)        # (H, 1), broadcasts over lanes
        for k in range(input_dim):                 # static unroll at trace time
            h = h + w1t[:, k:k + 1] * x[k:k + 1, :]   # (H,1)*(1,bt) -> (H,bt)
    else:
        h = jnp.dot(w1t_ref[...].astype(mxu_dtype), x.astype(mxu_dtype),
                    preferred_element_type=jnp.float32)
        h = h + b1_ref[...].astype(jnp.float32)
    h = act(h)                                     # (H, bt), f32

    # ---- Layer 2: MXU, batch on lanes, f32 accumulate.
    h = jnp.dot(w2t_ref[...], h.astype(mxu_dtype),
                preferred_element_type=jnp.float32)
    h = act(h + b2_ref[...].astype(jnp.float32))

    # ---- Layer 3: MXU, f32 accumulate.
    out = jnp.dot(w3t_ref[...], h.astype(mxu_dtype),
                  preferred_element_type=jnp.float32)
    out = out + b3_ref[...].astype(jnp.float32)

    oT_ref[...] = out.astype(oT_ref.dtype)


def trunknet_forward(y, params, *, activ='relu', batch_tile=512, mxu_dtype=None):
    """Fused TrunkNet forward pass with a Pallas TPU kernel.

    y      : (N, input_dim)
    params : dict with w1 (in,h), b1 (h,), w2 (h,h), b2 (h,), w3 (h,out), b3 (out,)
             (weights stored as (in, out), i.e. y @ W + b == PyTorch nn.Linear)
    mxu_dtype : operand dtype for the MXU matmuls (default: y.dtype). Use
                jnp.bfloat16 on v6e/v7x for ~2x MXU throughput; accumulation
                stays f32 either way.
    """
    w1, b1 = params['w1'], params['b1']
    w2, b2 = params['w2'], params['b2']
    w3, b3 = params['w3'], params['b3']

    N, input_dim = y.shape
    hidden_dim = w1.shape[1]
    output_dim = w3.shape[1]
    if mxu_dtype is None:
        mxu_dtype = y.dtype

    # ---- Batch tile: multiple of 128 lanes, no bigger than the padded batch,
    # and small enough that double-buffered activation tiles + weights fit
    # comfortably in VMEM (budget against v7x's 64 MiB, leave headroom).
    bt = max(_LANE, (int(batch_tile) // _LANE) * _LANE)
    bt = min(bt, pl.cdiv(N, _LANE) * _LANE)

    def _vmem_bytes(tile):
        f32 = 4
        mxu_b = jnp.dtype(mxu_dtype).itemsize
        weights = (hidden_dim * max(input_dim, 8) * f32         # w1T (f32)
                   + hidden_dim * hidden_dim * mxu_b            # w2T
                   + output_dim * hidden_dim * mxu_b            # w3T
                   + (2 * hidden_dim + output_dim) * f32)       # biases
        io_tiles = 2 * (max(input_dim, 8) + output_dim) * tile * y.dtype.itemsize
        live = (2 * hidden_dim + output_dim) * tile * f32       # in-kernel f32 temps
        return 2 * weights + io_tiles + live                    # weights double-buffered

    VMEM_BUDGET = 48 << 20   # stay under v7x's 64 MiB physical VMEM
    while bt > _LANE and _vmem_bytes(bt) > VMEM_BUDGET:
        bt -= _LANE

    N_pad = pl.cdiv(N, bt) * bt

    # Lane-dense transposed input: (input_dim, N_pad), zero-padded batch tail.
    yT = jnp.zeros((input_dim, N_pad), y.dtype).at[:, :N].set(y.T)

    # Transposed weights: layer l computes  h_l^T = W_l^T @ h_{l-1}^T + b_l.
    w1T = w1.T.astype(jnp.float32)       # (H, in)  - layer-1 path (VPU) stays f32
    w2T = w2.T.astype(mxu_dtype)         # (H, H)
    w3T = w3.T.astype(mxu_dtype)         # (out, H)
    b1c = b1.reshape(hidden_dim, 1).astype(jnp.float32)
    b2c = b2.reshape(hidden_dim, 1).astype(jnp.float32)
    b3c = b3.reshape(output_dim, 1).astype(jnp.float32)

    kernel = functools.partial(_trunknet_kernel, activ=activ,
                               input_dim=input_dim, mxu_dtype=mxu_dtype)

    grid = (N_pad // bt,)
    outT = pl.pallas_call(
        kernel,
        out_shape=jax.ShapeDtypeStruct((output_dim, N_pad), y.dtype),
        grid_spec=pltpu.PrefetchScalarGridSpec(
            num_scalar_prefetch=0,
            grid=grid,
            in_specs=[
                # batch-tiled, lane-dense activations (features x batch)
                pl.BlockSpec((input_dim, bt), lambda i: (0, i)),
                # weights / biases: full blocks, same block index every grid
                # step -> fetched once, resident across the batch loop.
                pl.BlockSpec((hidden_dim, input_dim), lambda i: (0, 0)),
                pl.BlockSpec((hidden_dim, 1), lambda i: (0, 0)),
                pl.BlockSpec((hidden_dim, hidden_dim), lambda i: (0, 0)),
                pl.BlockSpec((hidden_dim, 1), lambda i: (0, 0)),
                pl.BlockSpec((output_dim, hidden_dim), lambda i: (0, 0)),
                pl.BlockSpec((output_dim, 1), lambda i: (0, 0)),
            ],
            out_specs=pl.BlockSpec((output_dim, bt), lambda i: (0, i)),
        ),
        compiler_params=pltpu.CompilerParams(
            dimension_semantics=("parallel",),        # v7x: shard batch over 2 TCs
            vmem_limit_bytes=min(_vmem_bytes(bt) + (8 << 20), 60 << 20)),
    )(yT, w1T, b1c, w2T, b2c, w3T, b3c)

    # Back to (N, output_dim); drop batch padding.
    return outT.T[:N, :]


def init_params(key, input_dim, hidden_dim, output_dim):
    """Deterministic synthetic parameters (PyTorch-style uniform init ranges)."""
    ks = jax.random.split(key, 6)

    def lin(kw, kb, fan_in, fan_out):
        bound = 1.0 / jnp.sqrt(fan_in)
        w = jax.random.uniform(kw, (fan_in, fan_out), jnp.float32, -bound, bound)
        b = jax.random.uniform(kb, (fan_out,), jnp.float32, -bound, bound)
        return w, b

    w1, b1 = lin(ks[0], ks[1], input_dim, hidden_dim)
    w2, b2 = lin(ks[2], ks[3], hidden_dim, hidden_dim)
    w3, b3 = lin(ks[4], ks[5], hidden_dim, output_dim)
    return dict(w1=w1, b1=b1, w2=w2, b2=b2, w3=w3, b3=b3)


def trunknet_ref(y, p, activ='relu'):
    def act(x):
        if activ == 'silu':
            return x * jax.nn.sigmoid(x)
        elif activ == 'leaky':
            return jnp.where(x >= 0, x, 0.01 * x)
        return jnp.maximum(x, 0.0)
    h = act(y @ p['w1'] + p['b1'])
    h = act(h @ p['w2'] + p['b2'])
    return h @ p['w3'] + p['b3']


if __name__ == "__main__":
    # Small shapes consistent with a DeepONet trunk net: coords -> basis functions.
    input_dim, hidden_dim, output_dim = 2, 32, 16

    key = jax.random.PRNGKey(0)
    k_param, k_y1, k_y2, k_y3 = jax.random.split(key, 4)
    params = init_params(k_param, input_dim, hidden_dim, output_dim)

    # Case 1: tiny batch (exercises padding up to one 128-lane tile), ReLU.
    y_small = jax.random.normal(k_y1, (16, input_dim), jnp.float32)
    out_small = jax.block_until_ready(trunknet_forward(y_small, params, activ='relu'))
    ref_small = trunknet_ref(y_small, params, 'relu')
    assert out_small.shape == (16, output_dim)
    assert jnp.allclose(out_small, ref_small, atol=1e-5, rtol=1e-5), "relu mismatch"

    # Case 2: non-multiple-of-tile batch, multi-step grid, LeakyReLU.
    y_big = jax.random.normal(k_y2, (300, input_dim), jnp.float32)
    out_big = jax.block_until_ready(
        trunknet_forward(y_big, params, activ='leaky', batch_tile=128))
    ref_big = trunknet_ref(y_big, params, 'leaky')
    assert out_big.shape == (300, output_dim)
    assert jnp.allclose(out_big, ref_big, atol=1e-5, rtol=1e-5), "leaky mismatch"

    # Case 3: SiLU path (transcendental), slightly looser tolerance.
    y_mid = jax.random.normal(k_y3, (64, input_dim), jnp.float32)
    out_mid = jax.block_until_ready(trunknet_forward(y_mid, params, activ='silu'))
    ref_mid = trunknet_ref(y_mid, params, 'silu')
    assert out_mid.shape == (64, output_dim)
    assert jnp.allclose(out_mid, ref_mid, atol=1e-4, rtol=1e-4), "silu mismatch"

    print("KERNEL_OK")
</pallas_src>

<mosaic_0001>
module attributes {stable_mosaic.version = 11 : i64} {
  func.func @_trunknet_kernel(%arg0: i32, %arg1: memref<2x128xf32, #tpu.memory_space<vmem>>, %arg2: memref<32x2xf32, #tpu.memory_space<vmem>>, %arg3: memref<32x1xf32, #tpu.memory_space<vmem>>, %arg4: memref<32x32xf32, #tpu.memory_space<vmem>>, %arg5: memref<32x1xf32, #tpu.memory_space<vmem>>, %arg6: memref<16x32xf32, #tpu.memory_space<vmem>>, %arg7: memref<16x1xf32, #tpu.memory_space<vmem>>, %arg8: memref<16x128xf32, #tpu.memory_space<vmem>>) attributes {dimension_semantics = [#tpu.dimension_semantics<parallel>], iteration_bounds = array<i64: 1>, scalar_prefetch = 0 : i64, scratch_operands = 0 : i64, tpu.core_type = #tpu.core_type<tc>, window_params = [{transform_indices = @transform_0, window_bounds = array<i64: 2, 128>}, {pipeline_mode = #tpu.pipeline_mode<synchronous>, transform_indices = @transform_1, window_bounds = array<i64: 32, 2>}, {pipeline_mode = #tpu.pipeline_mode<synchronous>, transform_indices = @transform_2, window_bounds = array<i64: 32, 1>}, {pipeline_mode = #tpu.pipeline_mode<synchronous>, transform_indices = @transform_3, window_bounds = array<i64: 32, 32>}, {pipeline_mode = #tpu.pipeline_mode<synchronous>, transform_indices = @transform_4, window_bounds = array<i64: 32, 1>}, {pipeline_mode = #tpu.pipeline_mode<synchronous>, transform_indices = @transform_5, window_bounds = array<i64: 16, 32>}, {pipeline_mode = #tpu.pipeline_mode<synchronous>, transform_indices = @transform_6, window_bounds = array<i64: 16, 1>}, {transform_indices = @transform_7, window_bounds = array<i64: 16, 128>}]} {
    %c0 = arith.constant 0 : index
    %c0_0 = arith.constant 0 : index
    %0 = vector.load %arg1[%c0, %c0_0] : memref<2x128xf32, #tpu.memory_space<vmem>>, vector<2x128xf32>
    %c0_1 = arith.constant 0 : index
    %c0_2 = arith.constant 0 : index
    %1 = vector.load %arg2[%c0_1, %c0_2] : memref<32x2xf32, #tpu.memory_space<vmem>>, vector<32x2xf32>
    %c0_3 = arith.constant 0 : index
    %c0_4 = arith.constant 0 : index
    %2 = vector.load %arg3[%c0_3, %c0_4] : memref<32x1xf32, #tpu.memory_space<vmem>>, vector<32x1xf32>
    %3 = vector.extract_strided_slice %1 {offsets = [0, 0], sizes = [32, 1], strides = [1, 1]} : vector<32x2xf32> to vector<32x1xf32>
    %4 = vector.extract_strided_slice %0 {offsets = [0, 0], sizes = [1, 128], strides = [1, 1]} : vector<2x128xf32> to vector<1x128xf32>
    %5 = vector.broadcast %3 : vector<32x1xf32> to vector<32x128xf32>
    %6 = vector.broadcast %4 : vector<1x128xf32> to vector<32x128xf32>
    %7 = arith.mulf %5, %6 : vector<32x128xf32>
    %8 = vector.broadcast %2 : vector<32x1xf32> to vector<32x128xf32>
    %9 = arith.addf %8, %7 : vector<32x128xf32>
    %10 = vector.extract_strided_slice %1 {offsets = [0, 1], sizes = [32, 1], strides = [1, 1]} : vector<32x2xf32> to vector<32x1xf32>
    %11 = vector.extract_strided_slice %0 {offsets = [1, 0], sizes = [1, 128], strides = [1, 1]} : vector<2x128xf32> to vector<1x128xf32>
    %12 = vector.broadcast %10 : vector<32x1xf32> to vector<32x128xf32>
    %13 = vector.broadcast %11 : vector<1x128xf32> to vector<32x128xf32>
    %14 = arith.mulf %12, %13 : vector<32x128xf32>
    %15 = arith.addf %9, %14 : vector<32x128xf32>
    %cst = arith.constant 0.000000e+00 : f32
    %16 = vector.broadcast %cst : f32 to vector<32x128xf32>
    %17 = arith.maximumf %15, %16 : vector<32x128xf32>
    %c0_5 = arith.constant 0 : index
    %c0_6 = arith.constant 0 : index
    %18 = vector.load %arg4[%c0_5, %c0_6] : memref<32x32xf32, #tpu.memory_space<vmem>>, vector<32x32xf32>
    %cst_7 = arith.constant dense<0.000000e+00> : vector<32x128xf32>
    %19 = tpu.matmul %18, %17, %cst_7 {dimension_numbers = #tpu.dot_dimension_numbers<[1], [0], [0], [1], [0, 0, 1, 1], [], []>} : vector<32x32xf32>, vector<32x128xf32>, vector<32x128xf32> -> vector<32x128xf32>
    %c0_8 = arith.constant 0 : index
    %c0_9 = arith.constant 0 : index
    %20 = vector.load %arg5[%c0_8, %c0_9] : memref<32x1xf32, #tpu.memory_space<vmem>>, vector<32x1xf32>
    %21 = vector.broadcast %20 : vector<32x1xf32> to vector<32x128xf32>
    %22 = arith.addf %19, %21 : vector<32x128xf32>
    %cst_10 = arith.constant 0.000000e+00 : f32
    %23 = vector.broadcast %cst_10 : f32 to vector<32x128xf32>
    %24 = arith.maximumf %22, %23 : vector<32x128xf32>
    %c0_11 = arith.constant 0 : index
    %c0_12 = arith.constant 0 : index
    %25 = vector.load %arg6[%c0_11, %c0_12] : memref<16x32xf32, #tpu.memory_space<vmem>>, vector<16x32xf32>
    %cst_13 = arith.constant dense<0.000000e+00> : vector<16x128xf32>
    %26 = tpu.matmul %25, %24, %cst_13 {dimension_numbers = #tpu.dot_dimension_numbers<[1], [0], [0], [1], [0, 0, 1, 1], [], []>} : vector<16x32xf32>, vector<32x128xf32>, vector<16x128xf32> -> vector<16x128xf32>
    %c0_14 = arith.constant 0 : index
    %c0_15 = arith.constant 0 : index
    %27 = vector.load %arg7[%c0_14, %c0_15] : memref<16x1xf32, #tpu.memory_space<vmem>>, vector<16x1xf32>
    %28 = vector.broadcast %27 : vector<16x1xf32> to vector<16x128xf32>
    %29 = arith.addf %26, %28 : vector<16x128xf32>
    %c0_16 = arith.constant 0 : index
    %c0_17 = arith.constant 0 : index
    %30 = vector.load %arg8[%c0_16, %c0_17] : memref<16x128xf32, #tpu.memory_space<vmem>>, vector<16x128xf32>
    tpu.vector_store %arg8[%c0_16, %c0_17], %29 {strides = array<i32>} : memref<16x128xf32, #tpu.memory_space<vmem>>, vector<16x128xf32>,
    return
  }
  func.func @transform_0(%arg0: i32) -> (i32, i32) {
    %c0_i32 = arith.constant 0 : i32
    %c0_i32_0 = arith.constant 0 : i32
    return %c0_i32, %arg0 : i32, i32
  }
  func.func @transform_1(%arg0: i32) -> (i32, i32) {
    %c0_i32 = arith.constant 0 : i32
    %c0_i32_0 = arith.constant 0 : i32
    %c0_i32_1 = arith.constant 0 : i32
    return %c0_i32, %c0_i32_0 : i32, i32
  }
  func.func @transform_2(%arg0: i32) -> (i32, i32) {
    %c0_i32 = arith.constant 0 : i32
    %c0_i32_0 = arith.constant 0 : i32
    %c0_i32_1 = arith.constant 0 : i32
    return %c0_i32, %c0_i32_0 : i32, i32
  }
  func.func @transform_3(%arg0: i32) -> (i32, i32) {
    %c0_i32 = arith.constant 0 : i32
    %c0_i32_0 = arith.constant 0 : i32
    %c0_i32_1 = arith.constant 0 : i32
    return %c0_i32, %c0_i32_0 : i32, i32
  }
  func.func @transform_4(%arg0: i32) -> (i32, i32) {
    %c0_i32 = arith.constant 0 : i32
    %c0_i32_0 = arith.constant 0 : i32
    %c0_i32_1 = arith.constant 0 : i32
    return %c0_i32, %c0_i32_0 : i32, i32
  }
  func.func @transform_5(%arg0: i32) -> (i32, i32) {
    %c0_i32 = arith.constant 0 : i32
    %c0_i32_0 = arith.constant 0 : i32
    %c0_i32_1 = arith.constant 0 : i32
    return %c0_i32, %c0_i32_0 : i32, i32
  }
  func.func @transform_6(%arg0: i32) -> (i32, i32) {
    %c0_i32 = arith.constant 0 : i32
    %c0_i32_0 = arith.constant 0 : i32
    %c0_i32_1 = arith.constant 0 : i32
    return %c0_i32, %c0_i32_0 : i32, i32
  }
  func.func @transform_7(%arg0: i32) -> (i32, i32) {
    %c0_i32 = arith.constant 0 : i32
    %c0_i32_0 = arith.constant 0 : i32
    return %c0_i32, %arg0 : i32, i32
  }
}

</mosaic_0001>

<llo_original>
// kernel: tpu_custom_call.1
$region0: #{tpu_custom_call.1}
  #allocation0 [shape = 'u32[]', space=smem, size = 0x4, offset = 0x4, fixed_abs, tag = 'smem constant byte address 0x4 - core index']
  #allocation1 [shape = 'u32[72,128]{1,0:T(1,128)}', space=vmem, size = 0x9000, scoped, tag = 'internal scratch']
  %s0 = inlined_call_operand.vmem [shape: f32[2,128], index: 0, kind: input, shape index: {}]
  %s1 = inlined_call_operand.vmem [shape: f32[32,2], index: 1, kind: input, shape index: {}]
  %s2 = inlined_call_operand.vmem [shape: f32[32,1], index: 2, kind: input, shape index: {}]
  %s3 = inlined_call_operand.vmem [shape: f32[32,32], index: 3, kind: input, shape index: {}]
  %s4 = inlined_call_operand.vmem [shape: f32[32,1], index: 4, kind: input, shape index: {}]
  %s5 = inlined_call_operand.vmem [shape: f32[16,32], index: 5, kind: input, shape index: {}]
  %s6 = inlined_call_operand.vmem [shape: f32[16,1], index: 6, kind: input, shape index: {}]
  %s7 = inlined_call_operand.hbm [shape: f32[16,128], index: 7, kind: output, shape index: {}]
  %s8 = sld [smem:[#allocation0]]
  $region38: #{tpu_custom_call.1} parent=0
    _
  %s10 = ssub.s32 1, %s8
  %s11 = scalar_select 0, %s10, %s8
  $region1: #{tpu_custom_call.1} parent=0
    #allocation2 [shape = 'u8[8192]{0}', space=vmem, size = 0x2000, scoped, tag = 'output window, operand 0, single buffered']
    #allocation3 [shape = 's32[1]{0}', space=sflag, size = 0x4, scoped, tag = 'scoped memory for tpu_custom_call.1']
    %12 = vsyncpa [#allocation3], 0
    // Predicated region
    $region2: #{tpu_custom_call.1} parent=1 // pred_check
      _
    $region3: #{tpu_custom_call.1} parent=1 // pred_check_branch
      %14 = sbr.rel (0) target = $region5
    $region4: #{tpu_custom_call.1} parent=1 // pred_region
      _
    $region5: #{tpu_custom_call.1} parent=1 // pred_fallthru
      _
    // Predicated region
    $region6: #{tpu_custom_call.1} parent=1 // pred_check
      _
    $region7: #{tpu_custom_call.1} parent=1 // pred_check_branch
      %16 = sbr.rel (0) target = $region9
    $region8: #{tpu_custom_call.1} parent=1 // pred_region
      _
    $region9: #{tpu_custom_call.1} parent=1 // pred_fallthru
      _
    // Predicated region
    $region10: #{tpu_custom_call.1} parent=1 // pred_check
      _
    $region11: #{tpu_custom_call.1} parent=1 // pred_check_branch
      %18 = sbr.rel (0) target = $region13
    $region12: #{tpu_custom_call.1} parent=1 // pred_region
      _
    $region13: #{tpu_custom_call.1} parent=1 // pred_fallthru
      _
    // Predicated region
    $region14: #{tpu_custom_call.1} parent=1 // pred_check
      _
    $region15: #{tpu_custom_call.1} parent=1 // pred_check_branch
      %20 = sbr.rel (0) target = $region17
    $region16: #{tpu_custom_call.1} parent=1 // pred_region
      _
    $region17: #{tpu_custom_call.1} parent=1 // pred_fallthru
      _
    // Predicated region
    $region18: #{tpu_custom_call.1} parent=1 // pred_check
      _
    $region19: #{tpu_custom_call.1} parent=1 // pred_check_branch
      %22 = sbr.rel (0) target = $region21
    $region20: #{tpu_custom_call.1} parent=1 // pred_region
      _
    $region21: #{tpu_custom_call.1} parent=1 // pred_fallthru
      _
    // Predicated region
    $region22: #{tpu_custom_call.1} parent=1 // pred_check
      _
    $region23: #{tpu_custom_call.1} parent=1 // pred_check_branch
      %24 = sbr.rel (0) target = $region25
    $region24: #{tpu_custom_call.1} parent=1 // pred_region
      _
    $region25: #{tpu_custom_call.1} parent=1 // pred_fallthru
      _
    // Predicated region
    $region26: #{tpu_custom_call.1} parent=1 // pred_check
      _
    $region27: #{tpu_custom_call.1} parent=1 // pred_check_branch
      %26 = sbr.rel (0) target = $region29
    $region28: #{tpu_custom_call.1} parent=1 // pred_region
      _
    $region29: #{tpu_custom_call.1} parent=1 // pred_fallthru
      _
    %v27 = vld [vmem:[%s0] sm:$0x3]
    %v28 = vld [vmem:[%s1] sm:$0xff]
    %v29 = vld [vmem:[%s1 + $0x8] sm:$0xff]
    %v30 = vld [vmem:[%s1 + $0x10] sm:$0xff]
    %v31 = vld [vmem:[%s1 + $0x18] sm:$0xff]
    %v32 = vld [vmem:[%s2] sm:$0xff]
    %v33 = vld [vmem:[%s2 + $0x8] sm:$0xff]
    %v34 = vld [vmem:[%s2 + $0x10] sm:$0xff]
    %v35 = vld [vmem:[%s2 + $0x18] sm:$0xff]
    %37 = vset.pattern.permute.xlu0 0
    %38 = vperm.xlu0 %37, %v28
    %v39 = vpop.permute.xlu0 %38
    %42 = vset.pattern.permute.xlu0 0
    %43 = vperm.xlu0 %42, %v29
    %v44 = vpop.permute.xlu0 %43
    %47 = vset.pattern.permute.xlu0 0
    %48 = vperm.xlu0 %47, %v30
    %v49 = vpop.permute.xlu0 %48
    %52 = vset.pattern.permute.xlu0 0
    %53 = vperm.xlu0 %52, %v31
    %v54 = vpop.permute.xlu0 %53
    %v56 = vperm.slane %v27, 0
    %v57 = vmul.f32 %v39, %v56
    %v58 = vmul.f32 %v44, %v56
    %v59 = vmul.f32 %v49, %v56
    %v60 = vmul.f32 %v54, %v56
    %62 = vset.pattern.permute.xlu0 0
    %63 = vperm.xlu0 %62, %v32
    %v64 = vpop.permute.xlu0 %63
    %67 = vset.pattern.permute.xlu0 0
    %68 = vperm.xlu0 %67, %v33
    %v69 = vpop.permute.xlu0 %68
    %72 = vset.pattern.permute.xlu0 0
    %73 = vperm.xlu0 %72, %v34
    %v74 = vpop.permute.xlu0 %73
    %77 = vset.pattern.permute.xlu0 0
    %78 = vperm.xlu0 %77, %v35
    %v79 = vpop.permute.xlu0 %78
    %v81 = vadd.f32 %v64, %v57
    %v82 = vadd.f32 %v69, %v58
    %v83 = vadd.f32 %v74, %v59
    %v84 = vadd.f32 %v79, %v60
    %85 = vset.pattern.permute.xlu0 1
    %86 = vperm.xlu0 %85, %v28
    %v87 = vpop.permute.xlu0 %86
    %89 = vset.pattern.permute.xlu0 1
    %90 = vperm.xlu0 %89, %v29
    %v91 = vpop.permute.xlu0 %90
    %93 = vset.pattern.permute.xlu0 1
    %94 = vperm.xlu0 %93, %v30
    %v95 = vpop.permute.xlu0 %94
    %97 = vset.pattern.permute.xlu0 1
    %98 = vperm.xlu0 %97, %v31
    %v99 = vpop.permute.xlu0 %98
    %v101 = vperm.slane %v27, 1
    %v102 = vmul.f32 %v87, %v101
    %v103 = vmul.f32 %v91, %v101
    %v104 = vmul.f32 %v95, %v101
    %v105 = vmul.f32 %v99, %v101
    %v106 = vadd.f32 %v81, %v102
    %v107 = vadd.f32 %v82, %v103
    %v108 = vadd.f32 %v83, %v104
    %v109 = vadd.f32 %v84, %v105
    %v110 = vmax.f32 %v106, 0.0
    %v111 = vmax.f32 %v107, 0.0
    %v112 = vmax.f32 %v108, 0.0
    %v113 = vmax.f32 %v109, 0.0
    %v114 = vld [vmem:[%s3] sm:$0xff]
    %v115 = vld [vmem:[%s3 + $0x8] sm:$0xff]
    %v116 = vld [vmem:[%s3 + $0x10] sm:$0xff]
    %v117 = vld [vmem:[%s3 + $0x18] sm:$0xff]
    %v118 = vld [vmem:[%s4] sm:$0xff]
    %v119 = vld [vmem:[%s4 + $0x8] sm:$0xff]
    %v120 = vld [vmem:[%s4 + $0x10] sm:$0xff]
    %v121 = vld [vmem:[%s4 + $0x18] sm:$0xff]
    %123 = vset.pattern.permute.xlu0 0
    %124 = vperm.xlu0 %123, %v118
    %v125 = vpop.permute.xlu0 %124
    %128 = vset.pattern.permute.xlu0 0
    %129 = vperm.xlu0 %128, %v119
    %v130 = vpop.permute.xlu0 %129
    %133 = vset.pattern.permute.xlu0 0
    %134 = vperm.xlu0 %133, %v120
    %v135 = vpop.permute.xlu0 %134
    %138 = vset.pattern.permute.xlu0 0
    %139 = vperm.xlu0 %138, %v121
    %v140 = vpop.permute.xlu0 %139
    %vm142 = vcmask 261120
    %v144 = vsel %vm142, %v114, 0
    %v147 = vsel %vm142, %v115, 0
    %v150 = vsel %vm142, %v116, 0
    %v153 = vsel %vm142, %v117, 0
    %155 = vmatpush.msra.mxu0 0.0
    %156 = vmatpush.msra.mxu0 0.0
    %157 = vmatpush.msra.mxu0 0.0
    %158 = vmatpush.msra.mxu0 0.0
    %159 = vmatpush.msra.mxu0 0.0
    %160 = vmatpush.msra.mxu0 0.0
    %161 = vmatpush.msra.mxu0 0.0
    %162 = vmatpush.msra.mxu0 0.0
    %163 = vmatpush.msra.mxu0 0.0
    %164 = vmatpush.msra.mxu0 0.0
    %165 = vmatpush.msra.mxu0 0.0
    %166 = vmatpush.msra.mxu0 0.0
    %167 = vmatpush.msra.mxu0 %v113
    %168 = vmatpush.msra.mxu0 %v112
    %169 = vmatpush.msra.mxu0 %v111
    %170 = vmatpush.msra.mxu0 %v110
    %171 = vmatmul.f32.gmra.mxu0 %v144
    %v172 = vpop.f32.mrf.mxu0
    %v173 = vadd.f32 %v125, %v172
    %174 = vmatmul.f32.gmra.mxu0 %v147
    %v175 = vpop.f32.mrf.mxu0
    %v176 = vadd.f32 %v130, %v175
    %177 = vmatmul.f32.gmra.mxu0 %v150
    %v178 = vpop.f32.mrf.mxu0
    %v179 = vadd.f32 %v135, %v178
    %180 = vmatmul.f32.gmra.mxu0 %v153
    %v181 = vpop.f32.mrf.mxu0
    %v182 = vadd.f32 %v140, %v181
    %183 = vdwg.mxu0
    %v184 = vmax.f32 %v173, 0.0
    %v185 = vmax.f32 %v176, 0.0
    %v186 = vmax.f32 %v179, 0.0
    %v187 = vmax.f32 %v182, 0.0
    %v188 = vld [vmem:[%s5] sm:$0xff]
    %v189 = vld [vmem:[%s5 + $0x8] sm:$0xff]
    %v190 = vld [vmem:[%s6] sm:$0xff]
    %v191 = vld [vmem:[%s6 + $0x8] sm:$0xff]
    %193 = vset.pattern.permute.xlu0 0
    %194 = vperm.xlu0 %193, %v190
    %v195 = vpop.permute.xlu0 %194
    %198 = vset.pattern.permute.xlu0 0
    %199 = vperm.xlu0 %198, %v191
    %v200 = vpop.permute.xlu0 %199
    %v203 = vsel %vm142, %v188, 0
    %v206 = vsel %vm142, %v189, 0
    %208 = vmatpush.msra.mxu0 0.0
    %209 = vmatpush.msra.mxu0 0.0
    %210 = vmatpush.msra.mxu0 0.0
    %211 = vmatpush.msra.mxu0 0.0
    %212 = vmatpush.msra.mxu0 0.0
    %213 = vmatpush.msra.mxu0 0.0
    %214 = vmatpush.msra.mxu0 0.0
    %215 = vmatpush.msra.mxu0 0.0
    %216 = vmatpush.msra.mxu0 0.0
    %217 = vmatpush.msra.mxu0 0.0
    %218 = vmatpush.msra.mxu0 0.0
    %219 = vmatpush.msra.mxu0 0.0
    %220 = vmatpush.msra.mxu0 %v187
    %221 = vmatpush.msra.mxu0 %v186
    %222 = vmatpush.msra.mxu0 %v185
    %223 = vmatpush.msra.mxu0 %v184
    %224 = vmatmul.f32.gmra.mxu0 %v203
    %v225 = vpop.f32.mrf.mxu0
    %v226 = vadd.f32 %v195, %v225
    %227 = vmatmul.f32.gmra.mxu0 %v206
    %v228 = vpop.f32.mrf.mxu0
    %v229 = vadd.f32 %v200, %v228
    %230 = vdwg.mxu0
    %231 = vst [vmem:[#allocation2] sm:$0xff] %v226
    %232 = vst [vmem:[#allocation2 + $0x8] sm:$0xff] %v229
    // Predicated region
    $region30: #{tpu_custom_call.1} parent=1 // pred_check
      _
    $region31: #{tpu_custom_call.1} parent=1 // pred_check_branch
      %234 = sbr.rel (0) target = $region33
    $region32: #{tpu_custom_call.1} parent=1 // pred_region
      %236 = vsyncadd [#allocation3], 0
      %s237 = sshll.u32 [#allocation2], 4
      %s238 = int_to_ptr.vmem [resolvable:$true] %s237
      %s239 = sshll.u32 %s7, 4
      %s240 = int_to_ptr.hbm [resolvable:$true] %s239
      %245 = dma.vmem_to_hbm [thread:$0]  %s238, 256, %s240, [#allocation3], 128, 128, 8
    $region33: #{tpu_custom_call.1} parent=1 // pred_fallthru
      _
    // Predicated region
    $region34: #{tpu_custom_call.1} parent=1 // pred_check
      _
    $region35: #{tpu_custom_call.1} parent=1 // pred_check_branch
      %247 = sbr.rel (0) target = $region37
    $region36: #{tpu_custom_call.1} parent=1 // pred_region
      %249 = dma.done [#allocation3], 256
    $region37: #{tpu_custom_call.1} parent=1 // pred_fallthru
      _
    %250 = vsyncpa [#allocation3], 1

</llo_original>
